<compile_context>
chip_gen: v7x
topology: tpu7x:2x2x1
jax: 0.10.0
libtpu: 0.0.40
codegen_flags: <defaults>
</compile_context>

<pallas_src>
import functools

import jax
import jax.numpy as jnp
from jax.experimental import pallas as pl
from jax.experimental.pallas import tpu as pltpu


def _round_up(a, b):
    return (a + b - 1) // b * b


def _pad2(a, rows, cols):
    return jnp.pad(a, ((0, rows - a.shape[0]), (0, cols - a.shape[1])))


def mlp_classifier_kernel(x_ref, w1_ref, b1_ref, w2_ref, b2_ref, out_ref, *, num_class):
    # h1 = sigmoid(x @ W1 + b1); bf16 matmul inputs, f32 accumulate/elementwise.
    x = x_ref[...]                                                    # (TB, in_pad) bf16
    h1 = jnp.dot(x, w1_ref[...], preferred_element_type=jnp.float32)  # f32
    h1 = jax.nn.sigmoid(h1 + b1_ref[...])                             # EUP logistic, f32
    # TODO(synk): dropout path (with_dropout=True & training) not implemented; eval forward only.

    # logits = h1 @ W2 + b2  (h1 cast to bf16 for the MXU, f32 accumulate)
    logits = jnp.dot(h1.astype(w2_ref.dtype), w2_ref[...],
                     preferred_element_type=jnp.float32) + b2_ref[...]

    # Mask zero-padded class columns so they do not pollute log_softmax.
    col = jax.lax.broadcasted_iota(jnp.int32, logits.shape, 1)
    logits = jnp.where(col < num_class, logits, -jnp.inf)

    # Numerically stable log_softmax along dim=1.
    m = jnp.max(logits, axis=1, keepdims=True)
    shifted = logits - m
    lse = jnp.log(jnp.sum(jnp.exp(shifted), axis=1, keepdims=True))
    out_ref[...] = (shifted - lse).astype(out_ref.dtype)


def mlp_classifier_forward(x, w1, b1, w2, b2, *, block_b=256):
    """x: (B, input_size) f32; w1: (input_size, hidden); w2: (hidden, num_class).
    Returns log_softmax logits of shape (B, num_class), f32."""
    B, in_size = x.shape
    hidden = w1.shape[1]
    num_class = w2.shape[1]

    # Lane/sublane-friendly padded shapes.
    in_pad = _round_up(in_size, 128)
    hid_pad = _round_up(hidden, 128)
    cls_pad = _round_up(num_class, 128)
    tb = min(block_b, _round_up(B, 16))          # bf16 sublane-friendly batch tile
    b_pad = _round_up(B, tb)

    # bf16 matmul operands (zero padding is numerically inert for the matmuls),
    # f32 biases (kept 2D for clean broadcast in-kernel).
    x_p = _pad2(x, b_pad, in_pad).astype(jnp.bfloat16)
    w1_p = _pad2(w1, in_pad, hid_pad).astype(jnp.bfloat16)
    w2_p = _pad2(w2, hid_pad, cls_pad).astype(jnp.bfloat16)
    b1_p = _pad2(b1.reshape(1, -1).astype(jnp.float32), 1, hid_pad)
    b2_p = _pad2(b2.reshape(1, -1).astype(jnp.float32), 1, cls_pad)

    grid = (b_pad // tb,)

    # VMEM budget: double-buffered x/out tiles + resident weights/biases +
    # f32 activation temporaries, with headroom; capped below v7x's 64 MiB.
    tile_bytes = tb * in_pad * 2 + tb * cls_pad * 4
    weight_bytes = in_pad * hid_pad * 2 + hid_pad * cls_pad * 2 + (hid_pad + cls_pad) * 4
    act_bytes = tb * hid_pad * 4 + 2 * tb * cls_pad * 4
    vmem_limit = int(min(2 * tile_bytes + 2 * weight_bytes + act_bytes + (8 << 20), 48 << 20))

    vmem = pltpu.MemorySpace.VMEM
    kernel = functools.partial(mlp_classifier_kernel, num_class=num_class)

    out_padded = pl.pallas_call(
        kernel,
        out_shape=jax.ShapeDtypeStruct((b_pad, cls_pad), jnp.float32),
        grid=grid,
        in_specs=[
            pl.BlockSpec((tb, in_pad), lambda i: (i, 0), memory_space=vmem),      # x tile
            pl.BlockSpec((in_pad, hid_pad), lambda i: (0, 0), memory_space=vmem),  # W1 (resident)
            pl.BlockSpec((1, hid_pad), lambda i: (0, 0), memory_space=vmem),       # b1 (resident)
            pl.BlockSpec((hid_pad, cls_pad), lambda i: (0, 0), memory_space=vmem),  # W2 (resident)
            pl.BlockSpec((1, cls_pad), lambda i: (0, 0), memory_space=vmem),       # b2 (resident)
        ],
        out_specs=pl.BlockSpec((tb, cls_pad), lambda i: (i, 0), memory_space=vmem),
        compiler_params=pltpu.CompilerParams(
            dimension_semantics=("parallel",),
            vmem_limit_bytes=vmem_limit,
        ),
    )(x_p, w1_p, b1_p, w2_p, b2_p)

    return out_padded[:B, :num_class]


def glorot_uniform(key, fan_in, fan_out, shape):
    limit = jnp.sqrt(6.0 / (fan_in + fan_out))
    return jax.random.uniform(key, shape, dtype=jnp.float32,
                              minval=-limit, maxval=limit)


def reference_forward(x, w1, b1, w2, b2):
    # Same bf16-matmul / f32-elementwise recipe as the kernel, in plain JAX.
    h1 = jnp.dot(x.astype(jnp.bfloat16), w1.astype(jnp.bfloat16),
                 preferred_element_type=jnp.float32) + b1
    h1 = jax.nn.sigmoid(h1)
    logits = jnp.dot(h1.astype(jnp.bfloat16), w2.astype(jnp.bfloat16),
                     preferred_element_type=jnp.float32) + b2
    return jax.nn.log_softmax(logits, axis=1)


if __name__ == "__main__":
    # Small deterministic setup: batch=8, input_size=32, hidden=32, num_class=4
    B, input_size, hidden_size, num_class = 8, 32, 32, 4

    key = jax.random.PRNGKey(0)
    k_x, k_w1, k_w2 = jax.random.split(key, 3)

    x = jax.random.normal(k_x, (B, input_size), dtype=jnp.float32)

    # nn.Linear weight is (out, in); glorot_uniform in the reference uses
    # (fan_in, fan_out) = weight.size() = (out, in). Biases are zero.
    w1_torch = glorot_uniform(k_w1, hidden_size, input_size,
                              (hidden_size, input_size))     # (hidden, input)
    w2_torch = glorot_uniform(k_w2, num_class, hidden_size,
                              (num_class, hidden_size))      # (num_class, hidden)
    b1 = jnp.zeros((hidden_size,), dtype=jnp.float32)
    b2 = jnp.zeros((num_class,), dtype=jnp.float32)

    # Kernel consumes transposed weights: (in, out), i.e. x @ W + b.
    w1 = w1_torch.T  # (input_size, hidden)
    w2 = w2_torch.T  # (hidden, num_class)

    logits = mlp_classifier_forward(x, w1, b1, w2, b2)
    logits = jax.block_until_ready(logits)

    logits_ref = reference_forward(x, w1, b1, w2, b2)

    assert logits.shape == (B, num_class)
    assert bool(jnp.isfinite(logits).all())
    assert jnp.allclose(logits, logits_ref, atol=1e-3, rtol=1e-3)

    print("KERNEL_OK")
</pallas_src>

<mosaic_0001>
module attributes {stable_mosaic.version = 11 : i64} {
  func.func @mlp_classifier_kernel(%arg0: i32, %arg1: memref<16x128xbf16, #tpu.memory_space<vmem>>, %arg2: memref<128x128xbf16, #tpu.memory_space<vmem>>, %arg3: memref<1x128xf32, #tpu.memory_space<vmem>>, %arg4: memref<128x128xbf16, #tpu.memory_space<vmem>>, %arg5: memref<1x128xf32, #tpu.memory_space<vmem>>, %arg6: memref<16x128xf32, #tpu.memory_space<vmem>>) attributes {dimension_semantics = [#tpu.dimension_semantics<parallel>], iteration_bounds = array<i64: 1>, scalar_prefetch = 0 : i64, scratch_operands = 0 : i64, tpu.core_type = #tpu.core_type<tc>, window_params = [{transform_indices = @transform_0, window_bounds = array<i64: 16, 128>}, {pipeline_mode = #tpu.pipeline_mode<synchronous>, transform_indices = @transform_1, window_bounds = array<i64: 128, 128>}, {pipeline_mode = #tpu.pipeline_mode<synchronous>, transform_indices = @transform_2, window_bounds = array<i64: 1, 128>}, {pipeline_mode = #tpu.pipeline_mode<synchronous>, transform_indices = @transform_3, window_bounds = array<i64: 128, 128>}, {pipeline_mode = #tpu.pipeline_mode<synchronous>, transform_indices = @transform_4, window_bounds = array<i64: 1, 128>}, {transform_indices = @transform_5, window_bounds = array<i64: 16, 128>}]} {
    %c0 = arith.constant 0 : index
    %c0_0 = arith.constant 0 : index
    %0 = vector.load %arg1[%c0, %c0_0] : memref<16x128xbf16, #tpu.memory_space<vmem>>, vector<16x128xbf16>
    %c0_1 = arith.constant 0 : index
    %c0_2 = arith.constant 0 : index
    %1 = vector.load %arg2[%c0_1, %c0_2] : memref<128x128xbf16, #tpu.memory_space<vmem>>, vector<128x128xbf16>
    %cst = arith.constant dense<0.000000e+00> : vector<16x128xf32>
    %2 = tpu.matmul %0, %1, %cst {dimension_numbers = #tpu.dot_dimension_numbers<[1], [0], [0], [1], [0, 0, 1, 1], [], []>} : vector<16x128xbf16>, vector<128x128xbf16>, vector<16x128xf32> -> vector<16x128xf32>
    %c0_3 = arith.constant 0 : index
    %c0_4 = arith.constant 0 : index
    %3 = vector.load %arg3[%c0_3, %c0_4] : memref<1x128xf32, #tpu.memory_space<vmem>>, vector<1x128xf32>
    %4 = vector.broadcast %3 : vector<1x128xf32> to vector<16x128xf32>
    %5 = arith.addf %2, %4 : vector<16x128xf32>
    %6 = arith.negf %5 : vector<16x128xf32>
    %7 = math.exp %6 : vector<16x128xf32>
    %cst_5 = arith.constant 1.000000e+00 : f32
    %8 = vector.broadcast %cst_5 : f32 to vector<16x128xf32>
    %9 = arith.addf %8, %7 : vector<16x128xf32>
    %10 = arith.divf %8, %9 : vector<16x128xf32>
    %11 = arith.truncf %10 : vector<16x128xf32> to vector<16x128xbf16>
    %c0_6 = arith.constant 0 : index
    %c0_7 = arith.constant 0 : index
    %12 = vector.load %arg4[%c0_6, %c0_7] : memref<128x128xbf16, #tpu.memory_space<vmem>>, vector<128x128xbf16>
    %cst_8 = arith.constant dense<0.000000e+00> : vector<16x128xf32>
    %13 = tpu.matmul %11, %12, %cst_8 {dimension_numbers = #tpu.dot_dimension_numbers<[1], [0], [0], [1], [0, 0, 1, 1], [], []>} : vector<16x128xbf16>, vector<128x128xbf16>, vector<16x128xf32> -> vector<16x128xf32>
    %c0_9 = arith.constant 0 : index
    %c0_10 = arith.constant 0 : index
    %14 = vector.load %arg5[%c0_9, %c0_10] : memref<1x128xf32, #tpu.memory_space<vmem>>, vector<1x128xf32>
    %15 = vector.broadcast %14 : vector<1x128xf32> to vector<16x128xf32>
    %16 = arith.addf %13, %15 : vector<16x128xf32>
    %17 = tpu.iota {dimensions = array<i32: 1>} : vector<16x128xi32>
    %c4_i32 = arith.constant 4 : i32
    %18 = vector.broadcast %c4_i32 : i32 to vector<16x128xi32>
    %19 = arith.cmpi slt, %17, %18 : vector<16x128xi32>
    %cst_11 = arith.constant 0xFF800000 : f32
    %20 = vector.broadcast %cst_11 : f32 to vector<16x128xf32>
    %21 = arith.select %19, %16, %20 : vector<16x128xi1>, vector<16x128xf32>
    %cst_12 = arith.constant dense<0xFF800000> : vector<16xf32>
    %22 = vector.multi_reduction <maximumf>, %21, %cst_12 [1] : vector<16x128xf32> to vector<16xf32>
    %23 = vector.shape_cast %22 : vector<16xf32> to vector<16x1xf32>
    %24 = vector.broadcast %23 : vector<16x1xf32> to vector<16x128xf32>
    %25 = arith.subf %21, %24 : vector<16x128xf32>
    %26 = math.exp %25 : vector<16x128xf32>
    %cst_13 = arith.constant dense<0.000000e+00> : vector<16xf32>
    %27 = vector.multi_reduction <add>, %26, %cst_13 [1] : vector<16x128xf32> to vector<16xf32>
    %28 = vector.shape_cast %27 : vector<16xf32> to vector<16x1xf32>
    %29 = math.log %28 : vector<16x1xf32>
    %30 = vector.broadcast %29 : vector<16x1xf32> to vector<16x128xf32>
    %31 = arith.subf %25, %30 : vector<16x128xf32>
    %c0_14 = arith.constant 0 : index
    %c0_15 = arith.constant 0 : index
    %32 = vector.load %arg6[%c0_14, %c0_15] : memref<16x128xf32, #tpu.memory_space<vmem>>, vector<16x128xf32>
    tpu.vector_store %arg6[%c0_14, %c0_15], %31 {strides = array<i32>} : memref<16x128xf32, #tpu.memory_space<vmem>>, vector<16x128xf32>,
    return
  }
  func.func @transform_0(%arg0: i32) -> (i32, i32) {
    %c0_i32 = arith.constant 0 : i32
    %c0_i32_0 = arith.constant 0 : i32
    return %arg0, %c0_i32 : i32, i32
  }
  func.func @transform_1(%arg0: i32) -> (i32, i32) {
    %c0_i32 = arith.constant 0 : i32
    %c0_i32_0 = arith.constant 0 : i32
    %c0_i32_1 = arith.constant 0 : i32
    return %c0_i32, %c0_i32_0 : i32, i32
  }
  func.func @transform_2(%arg0: i32) -> (i32, i32) {
    %c0_i32 = arith.constant 0 : i32
    %c0_i32_0 = arith.constant 0 : i32
    %c0_i32_1 = arith.constant 0 : i32
    return %c0_i32, %c0_i32_0 : i32, i32
  }
  func.func @transform_3(%arg0: i32) -> (i32, i32) {
    %c0_i32 = arith.constant 0 : i32
    %c0_i32_0 = arith.constant 0 : i32
    %c0_i32_1 = arith.constant 0 : i32
    return %c0_i32, %c0_i32_0 : i32, i32
  }
  func.func @transform_4(%arg0: i32) -> (i32, i32) {
    %c0_i32 = arith.constant 0 : i32
    %c0_i32_0 = arith.constant 0 : i32
    %c0_i32_1 = arith.constant 0 : i32
    return %c0_i32, %c0_i32_0 : i32, i32
  }
  func.func @transform_5(%arg0: i32) -> (i32, i32) {
    %c0_i32 = arith.constant 0 : i32
    %c0_i32_0 = arith.constant 0 : i32
    return %arg0, %c0_i32 : i32, i32
  }
}

</mosaic_0001>

<llo_original>
// kernel: tpu_custom_call.1
$region0: #{tpu_custom_call.1}
  #allocation0 [shape = 'u32[]', space=smem, size = 0x4, offset = 0x4, fixed_abs, tag = 'smem constant byte address 0x4 - core index']
  #allocation1 [shape = 'u32[144,128]{1,0:T(1,128)}', space=vmem, size = 0x12000, scoped, tag = 'internal scratch']
  %s0 = inlined_call_operand.hbm [shape: bf16[16,128], index: 0, kind: input, shape index: {}]
  %s1 = inlined_call_operand.hbm [shape: bf16[128,128], index: 1, kind: input, shape index: {}]
  %s2 = inlined_call_operand.vmem [shape: f32[1,128], index: 2, kind: input, shape index: {}]
  %s3 = inlined_call_operand.hbm [shape: bf16[128,128], index: 3, kind: input, shape index: {}]
  %s4 = inlined_call_operand.vmem [shape: f32[1,128], index: 4, kind: input, shape index: {}]
  %s5 = inlined_call_operand.hbm [shape: f32[16,128], index: 5, kind: output, shape index: {}]
  %s6 = sld [smem:[#allocation0]]
  $region42: #{tpu_custom_call.1} parent=0
    _
  %s8 = ssub.s32 1, %s6
  %s9 = scalar_select 0, %s8, %s6
  $region1: #{tpu_custom_call.1} parent=0
    #allocation2 [shape = 'u8[4096]{0}', space=vmem, size = 0x1000, scoped, tag = 'input window, operand 0, single buffered']
    #allocation3 [shape = 's32[1]{0}', space=sflag, size = 0x4, scoped, tag = 'scoped memory for tpu_custom_call.1']
    #allocation4 [shape = 's32[1]{0}', space=sflag, size = 0x4, scoped, tag = 'scoped memory for tpu_custom_call.1']
    #allocation5 [shape = 'u8[32768]{0}', space=vmem, size = 0x8000, scoped, tag = 'input window, operand 1, single buffered']
    #allocation6 [shape = 's32[1]{0}', space=sflag, size = 0x4, scoped, tag = 'scoped memory for tpu_custom_call.1']
    #allocation7 [shape = 'u8[32768]{0}', space=vmem, size = 0x8000, scoped, tag = 'input window, operand 3, single buffered']
    #allocation8 [shape = 'u8[8192]{0}', space=vmem, size = 0x2000, scoped, tag = 'output window, operand 0, single buffered']
    %10 = vsyncpa [#allocation3], 0
    %11 = vsyncpa [#allocation6], 0
    %12 = vsyncpa [#allocation4], 0
    // Predicated region
    $region2: #{tpu_custom_call.1} parent=1 // pred_check
      _
    $region3: #{tpu_custom_call.1} parent=1 // pred_check_branch
      %14 = sbr.rel (0) target = $region5
    $region4: #{tpu_custom_call.1} parent=1 // pred_region
      %s16 = ssub.s32 128, 128
      %17 = vsyncadd [#allocation3], %s16
      %s18 = sshll.u32 [#allocation2], 4
      %s19 = int_to_ptr.vmem [resolvable:$true] %s18
      %24 = dma.hbm_to_vmem [thread:$0]  %s0, 128, %s19, [#allocation3], 64, 64, 4
    $region5: #{tpu_custom_call.1} parent=1 // pred_fallthru
      _
    // Predicated region
    $region6: #{tpu_custom_call.1} parent=1 // pred_check
      _
    $region7: #{tpu_custom_call.1} parent=1 // pred_check_branch
      %26 = sbr.rel (0) target = $region9
    $region8: #{tpu_custom_call.1} parent=1 // pred_region
      %s28 = ssub.s32 1024, 1024
      %29 = vsyncadd [#allocation6], %s28
      %s30 = sshll.u32 [#allocation5], 4
      %s31 = int_to_ptr.vmem [resolvable:$true] %s30
      %36 = dma.hbm_to_vmem [thread:$0]  %s1, 1024, %s31, [#allocation6], 64, 64, 4
    $region9: #{tpu_custom_call.1} parent=1 // pred_fallthru
      _
    // Predicated region
    $region10: #{tpu_custom_call.1} parent=1 // pred_check
      _
    $region11: #{tpu_custom_call.1} parent=1 // pred_check_branch
      %38 = sbr.rel (0) target = $region13
    $region12: #{tpu_custom_call.1} parent=1 // pred_region
      _
    $region13: #{tpu_custom_call.1} parent=1 // pred_fallthru
      _
    // Predicated region
    $region14: #{tpu_custom_call.1} parent=1 // pred_check
      _
    $region15: #{tpu_custom_call.1} parent=1 // pred_check_branch
      %40 = sbr.rel (0) target = $region17
    $region16: #{tpu_custom_call.1} parent=1 // pred_region
      %s42 = ssub.s32 1024, 1024
      %43 = vsyncadd [#allocation6], %s42
      %s44 = sshll.u32 [#allocation7], 4
      %s45 = int_to_ptr.vmem [resolvable:$true] %s44
      %50 = dma.hbm_to_vmem [thread:$0]  %s3, 1024, %s45, [#allocation6], 64, 64, 4
    $region17: #{tpu_custom_call.1} parent=1 // pred_fallthru
      _
    // Predicated region
    $region18: #{tpu_custom_call.1} parent=1 // pred_check
      _
    $region19: #{tpu_custom_call.1} parent=1 // pred_check_branch
      %52 = sbr.rel (0) target = $region21
    $region20: #{tpu_custom_call.1} parent=1 // pred_region
      _
    $region21: #{tpu_custom_call.1} parent=1 // pred_fallthru
      _
    // Predicated region
    $region22: #{tpu_custom_call.1} parent=1 // pred_check
      _
    $region23: #{tpu_custom_call.1} parent=1 // pred_check_branch
      %54 = sbr.rel (0) target = $region25
    $region24: #{tpu_custom_call.1} parent=1 // pred_region
      %55 = dma.done [#allocation3], 128
    $region25: #{tpu_custom_call.1} parent=1 // pred_fallthru
      _
    // Predicated region
    $region26: #{tpu_custom_call.1} parent=1 // pred_check
      _
    $region27: #{tpu_custom_call.1} parent=1 // pred_check_branch
      %57 = sbr.rel (0) target = $region29
    $region28: #{tpu_custom_call.1} parent=1 // pred_region
      %58 = dma.done [#allocation6], 1024
    $region29: #{tpu_custom_call.1} parent=1 // pred_fallthru
      _
    // Predicated region
    $region30: #{tpu_custom_call.1} parent=1 // pred_check
      _
    $region31: #{tpu_custom_call.1} parent=1 // pred_check_branch
      %60 = sbr.rel (0) target = $region33
    $region32: #{tpu_custom_call.1} parent=1 // pred_region
      %61 = dma.done [#allocation6], 1024
    $region33: #{tpu_custom_call.1} parent=1 // pred_fallthru
      _
    %v63 = vld [vmem:[#allocation2] sm:$0xf]
    %v64 = vld [vmem:[#allocation2 + $0x4] sm:$0xf]
    %v65 = vld [vmem:[#allocation5] sm:$0xf]
    %v66 = vld [vmem:[#allocation5 + $0x4] sm:$0xf]
    %v67 = vld [vmem:[#allocation5 + $0x8] sm:$0xf]
    %v68 = vld [vmem:[#allocation5 + $0xc] sm:$0xf]
    %v69 = vld [vmem:[#allocation5 + $0x10] sm:$0xf]
    %v70 = vld [vmem:[#allocation5 + $0x14] sm:$0xf]
    %v71 = vld [vmem:[#allocation5 + $0x18] sm:$0xf]
    %v72 = vld [vmem:[#allocation5 + $0x1c] sm:$0xf]
    %v73 = vld [vmem:[#allocation5 + $0x20] sm:$0xf]
    %v74 = vld [vmem:[#allocation5 + $0x24] sm:$0xf]
    %v75 = vld [vmem:[#allocation5 + $0x28] sm:$0xf]
    %v76 = vld [vmem:[#allocation5 + $0x2c] sm:$0xf]
    %v77 = vld [vmem:[#allocation5 + $0x30] sm:$0xf]
    %v78 = vld [vmem:[#allocation5 + $0x34] sm:$0xf]
    %v79 = vld [vmem:[#allocation5 + $0x38] sm:$0xf]
    %v80 = vld [vmem:[#allocation5 + $0x3c] sm:$0xf]
    %v81 = vld [vmem:[%s2] sm:$0x1]
    %v83 = vlaneseq
    %v84 = vshrl.u32 %v83, 7
    %v85 = vsub.s32 0, %v84
    %v86 = vrot.slane %v81, %v85
    %v90 = vunpack.c.l.b16 %v63
    %v91 = vunpack.c.l.b16 %v64
    %v92 = vpack.c.b16 %v91, %v90
    %v110 = vunpack.c.l.b16 %v65
    %v111 = vunpack.c.l.b16 %v66
    %v112 = vunpack.c.l.b16 %v67
    %v113 = vunpack.c.l.b16 %v68
    %v114 = vunpack.c.l.b16 %v69
    %v115 = vunpack.c.l.b16 %v70
    %v116 = vunpack.c.l.b16 %v71
    %v117 = vunpack.c.l.b16 %v72
    %v118 = vunpack.c.l.b16 %v73
    %v119 = vunpack.c.l.b16 %v74
    %v120 = vunpack.c.l.b16 %v75
    %v121 = vunpack.c.l.b16 %v76
    %v122 = vunpack.c.l.b16 %v77
    %v123 = vunpack.c.l.b16 %v78
    %v124 = vunpack.c.l.b16 %v79
    %v125 = vunpack.c.l.b16 %v80
    %v126 = vpack.c.b16 %v111, %v110
    %v127 = vpack.c.b16 %v113, %v112
    %v128 = vpack.c.b16 %v115, %v114
    %v129 = vpack.c.b16 %v117, %v116
    %v130 = vpack.c.b16 %v119, %v118
    %v131 = vpack.c.b16 %v121, %v120
    %v132 = vpack.c.b16 %v123, %v122
    %v133 = vpack.c.b16 %v125, %v124
    %142 = vmatprep.subr.bf16.mxu0 0
    %143 = vmatpush1.bf16.msra.mxu0 %v126
    %144 = vmatprep.subr.bf16.mxu0 0
    %145 = vmatpush1.bf16.msra.mxu0 %v127
    %146 = vmatprep.subr.bf16.mxu0 0
    %147 = vmatpush1.bf16.msra.mxu0 %v128
    %148 = vmatprep.subr.bf16.mxu0 0
    %149 = vmatpush1.bf16.msra.mxu0 %v129
    %150 = vmatprep.subr.bf16.mxu0 0
    %151 = vmatpush1.bf16.msra.mxu0 %v130
    %152 = vmatprep.subr.bf16.mxu0 0
    %153 = vmatpush1.bf16.msra.mxu0 %v131
    %154 = vmatprep.subr.bf16.mxu0 0
    %155 = vmatpush1.bf16.msra.mxu0 %v132
    %156 = vmatprep.subr.bf16.mxu0 0
    %157 = vmatpush1.bf16.msra.mxu0 %v133
    %158 = vmatprep.subr.bf16.mxu0 0
    %159 = vmatpush1.bf16.msra.mxu0 0
    %160 = vmatprep.subr.bf16.mxu0 0
    %161 = vmatpush1.bf16.msra.mxu0 0
    %162 = vmatprep.subr.bf16.mxu0 0
    %163 = vmatpush1.bf16.msra.mxu0 0
    %164 = vmatprep.subr.bf16.mxu0 0
    %165 = vmatpush1.bf16.msra.mxu0 0
    %166 = vmatprep.subr.bf16.mxu0 0
    %167 = vmatpush1.bf16.msra.mxu0 0
    %168 = vmatprep.subr.bf16.mxu0 0
    %169 = vmatpush1.bf16.msra.mxu0 0
    %170 = vmatprep.subr.bf16.mxu0 0
    %171 = vmatpush1.bf16.msra.mxu0 0
    %172 = vmatprep.subr.bf16.mxu0 0
    %173 = vmatpush1.bf16.msra.mxu0 0
    %174 = vmatprep.mubr.bf16.mxu0 0
    %175 = vmatmul.mubr.bf16.gmra.mrb[0].mxu0 %v92
    %v176 = vpop.f32.mrb[0].mxu0
    %v177 = vadd.f32 %v86, %v176
    %v178 = vpop.f32.mrb[0].mxu0
    %v179 = vpop.f32.mrb[0].mxu0
    %v180 = vadd.f32 %v86, %v179
    %v181 = vpop.f32.mrb[0].mxu0
    %182 = vdwg.mxu0
    %v183 = vxor.u32 %v177, 2147483648
    %v184 = vxor.u32 %v180, 2147483648
    %v185 = vmul.f32 %v183, 1.442695
    %v186 = vpow.pop %v185
    %v187 = vmul.f32 %v184, 1.442695
    %v188 = vpow.pop %v187
    %v189 = vadd.f32 %v186, 1.0
    %v190 = vadd.f32 %v188, 1.0
    %v191 = vrcp.pop %v189
    %v192 = vmul.f32 1.0, %v191
    %v193 = vrcp.pop %v190
    %v194 = vmul.f32 1.0, %v193
    %v195 = vpack.c.bf16 %v194, %v192
    %v196 = vld [vmem:[#allocation7] sm:$0xf]
    %v197 = vld [vmem:[#allocation7 + $0x4] sm:$0xf]
    %v198 = vld [vmem:[#allocation7 + $0x8] sm:$0xf]
    %v199 = vld [vmem:[#allocation7 + $0xc] sm:$0xf]
    %v200 = vld [vmem:[#allocation7 + $0x10] sm:$0xf]
    %v201 = vld [vmem:[#allocation7 + $0x14] sm:$0xf]
    %v202 = vld [vmem:[#allocation7 + $0x18] sm:$0xf]
    %v203 = vld [vmem:[#allocation7 + $0x1c] sm:$0xf]
    %v204 = vld [vmem:[#allocation7 + $0x20] sm:$0xf]
    %v205 = vld [vmem:[#allocation7 + $0x24] sm:$0xf]
    %v206 = vld [vmem:[#allocation7 + $0x28] sm:$0xf]
    %v207 = vld [vmem:[#allocation7 + $0x2c] sm:$0xf]
    %v208 = vld [vmem:[#allocation7 + $0x30] sm:$0xf]
    %v209 = vld [vmem:[#allocation7 + $0x34] sm:$0xf]
    %v210 = vld [vmem:[#allocation7 + $0x38] sm:$0xf]
    %v211 = vld [vmem:[#allocation7 + $0x3c] sm:$0xf]
    %v212 = vld [vmem:[%s4] sm:$0x1]
    %v214 = vlaneseq
    %v215 = vshrl.u32 %v214, 7
    %v216 = vsub.s32 0, %v215
    %v217 = vrot.slane %v212, %v216
    %v235 = vunpack.c.l.b16 %v196
    %v236 = vunpack.c.l.b16 %v197
    %v237 = vunpack.c.l.b16 %v198
    %v238 = vunpack.c.l.b16 %v199
    %v239 = vunpack.c.l.b16 %v200
    %v240 = vunpack.c.l.b16 %v201
    %v241 = vunpack.c.l.b16 %v202
    %v242 = vunpack.c.l.b16 %v203
    %v243 = vunpack.c.l.b16 %v204
    %v244 = vunpack.c.l.b16 %v205
    %v245 = vunpack.c.l.b16 %v206
    %v246 = vunpack.c.l.b16 %v207
    %v247 = vunpack.c.l.b16 %v208
    %v248 = vunpack.c.l.b16 %v209
    %v249 = vunpack.c.l.b16 %v210
    %v250 = vunpack.c.l.b16 %v211
    %v251 = vpack.c.b16 %v236, %v235
    %v252 = vpack.c.b16 %v238, %v237
    %v253 = vpack.c.b16 %v240, %v239
    %v254 = vpack.c.b16 %v242, %v241
    %v255 = vpack.c.b16 %v244, %v243
    %v256 = vpack.c.b16 %v246, %v245
    %v257 = vpack.c.b16 %v248, %v247
    %v258 = vpack.c.b16 %v250, %v249
    %267 = vmatprep.subr.bf16.mxu0 0
    %268 = vmatpush1.bf16.msra.mxu0 %v251
    %269 = vmatprep.subr.bf16.mxu0 0
    %270 = vmatpush1.bf16.msra.mxu0 %v252
    %271 = vmatprep.subr.bf16.mxu0 0
    %272 = vmatpush1.bf16.msra.mxu0 %v253
    %273 = vmatprep.subr.bf16.mxu0 0
    %274 = vmatpush1.bf16.msra.mxu0 %v254
    %275 = vmatprep.subr.bf16.mxu0 0
    %276 = vmatpush1.bf16.msra.mxu0 %v255
    %277 = vmatprep.subr.bf16.mxu0 0
    %278 = vmatpush1.bf16.msra.mxu0 %v256
    %279 = vmatprep.subr.bf16.mxu0 0
    %280 = vmatpush1.bf16.msra.mxu0 %v257
    %281 = vmatprep.subr.bf16.mxu0 0
    %282 = vmatpush1.bf16.msra.mxu0 %v258
    %283 = vmatprep.subr.bf16.mxu0 0
    %284 = vmatpush1.bf16.msra.mxu0 0
    %285 = vmatprep.subr.bf16.mxu0 0
    %286 = vmatpush1.bf16.msra.mxu0 0
    %287 = vmatprep.subr.bf16.mxu0 0
    %288 = vmatpush1.bf16.msra.mxu0 0
    %289 = vmatprep.subr.bf16.mxu0 0
    %290 = vmatpush1.bf16.msra.mxu0 0
    %291 = vmatprep.subr.bf16.mxu0 0
    %292 = vmatpush1.bf16.msra.mxu0 0
    %293 = vmatprep.subr.bf16.mxu0 0
    %294 = vmatpush1.bf16.msra.mxu0 0
    %295 = vmatprep.subr.bf16.mxu0 0
    %296 = vmatpush1.bf16.msra.mxu0 0
    %297 = vmatprep.subr.bf16.mxu0 0
    %298 = vmatpush1.bf16.msra.mxu0 0
    %299 = vmatprep.mubr.bf16.mxu0 0
    %300 = vmatmul.mubr.bf16.gmra.mrb[0].mxu0 %v195
    %v301 = vpop.f32.mrb[0].mxu0
    %v302 = vadd.f32 %v217, %v301
    %v303 = vpop.f32.mrb[0].mxu0
    %v304 = vpop.f32.mrb[0].mxu0
    %v305 = vadd.f32 %v217, %v304
    %v306 = vpop.f32.mrb[0].mxu0
    %307 = vdwg.mxu0
    %v308 = vlaneseq
    %v309 = vand.u32 %v308, 127
    %vm310 = vcmp.lt.s32.totalorder %v309, 4
    %v311 = vsel %vm310, %v302, -inf
    %v312 = vsel %vm310, %v305, -inf
    %313 = vmax.xlane.f32.xlu0 %v311
    %v314 = vpop.xlane.xlu0 %313
    %315 = vmax.xlane.f32.xlu0 %v312
    %v316 = vpop.xlane.xlu0 %315
    %v317 = vsub.f32 %v311, %v314
    %v318 = vsub.f32 %v312, %v316
    %v319 = vmul.f32 %v317, 1.442695
    %v320 = vpow.pop %v319
    %v321 = vmul.f32 %v318, 1.442695
    %v322 = vpow.pop %v321
    %323 = vadd.xlane.f32.xlu0 %v320
    %v324 = vpop.xlane.xlu0 %323
    %325 = vadd.xlane.f32.xlu0 %v322
    %v326 = vpop.xlane.xlu0 %325
    %v327 = vlog2.pop %v324
    %v328 = vmul.f32 %v327, 0.6931472
    %v329 = vlog2.pop %v326
    %v330 = vmul.f32 %v329, 0.6931472
    %v331 = vsub.f32 %v317, %v328
    %v332 = vsub.f32 %v318, %v330
    %333 = vst [vmem:[#allocation8] sm:$0xff] %v331
    %334 = vst [vmem:[#allocation8 + $0x8] sm:$0xff] %v332
    // Predicated region
    $region34: #{tpu_custom_call.1} parent=1 // pred_check
      _
    $region35: #{tpu_custom_call.1} parent=1 // pred_check_branch
      %336 = sbr.rel (0) target = $region37
    $region36: #{tpu_custom_call.1} parent=1 // pred_region
      %s338 = ssub.s32 256, 256
      %339 = vsyncadd [#allocation4], %s338
      %s340 = sshll.u32 [#allocation8], 4
      %s341 = int_to_ptr.vmem [resolvable:$true] %s340
      %346 = dma.vmem_to_hbm [thread:$0]  %s341, 256, %s5, [#allocation4], 128, 128, 8
    $region37: #{tpu_custom_call.1} parent=1 // pred_fallthru
      _
    // Predicated region
    $region38: #{tpu_custom_call.1} parent=1 // pred_check
      _
    $region39: #{tpu_custom_call.1} parent=1 // pred_check_branch
      %348 = sbr.rel (0) target = $region41
    $region40: #{tpu_custom_call.1} parent=1 // pred_region
      %349 = dma.done [#allocation4], 256
    $region41: #{tpu_custom_call.1} parent=1 // pred_fallthru
      _
    %350 = vsyncpa [#allocation3], 1
    %351 = vsyncpa [#allocation6], 1
    %352 = vsyncpa [#allocation4], 1

</llo_original>
